<compile_context>
chip_gen: v7x
topology: tpu7x:2x2x1
jax: 0.10.0
libtpu: 0.0.40
codegen_flags: <defaults>
</compile_context>

<pallas_src>
import jax
import jax.numpy as jnp
from jax.experimental import pallas as pl
from jax.experimental.pallas import tpu as pltpu


def pgb_kernel(x_ref, cw_ref, scale_ref, bias_ref, out_ref):
    # x_ref:     (D, TN)  one lane-dense N-tile of the per-batch feature slab
    # cw_ref:    (K, D)   pre-scaled codewords: -2 * scale[:, None] * codewords
    # scale_ref: (K, 1)
    # bias_ref:  (K, 1)   scale * ||codewords||^2
    # out_ref:   (K, TN)  lane-dense output tile (A transposed)
    x = x_ref[...]                                            # (D, TN) f32

    x2 = jnp.sum(x * x, axis=0, keepdims=True)                # (1, TN) sublane reduce
    # MXU: pre-scaled codewords (K, D) @ x (D, TN) -> (K, TN); no transpose.
    # (Kept f32: at small D/K the kernel is HBM-bound, bf16 MXU buys nothing.)
    cross = jnp.dot(cw_ref[...], x, preferred_element_type=jnp.float32)
    sl = scale_ref[...] * x2 + cross + bias_ref[...]          # (K, TN)

    # softmax over the codeword axis K (sublane reduce; K is small)
    m = jnp.max(sl, axis=0, keepdims=True)                    # (1, TN)
    e = jnp.exp(sl - m)                                       # EUP
    inv = pl.reciprocal(jnp.sum(e, axis=0, keepdims=True), approx=True)  # EUP vrcp
    out_ref[...] = (e * inv).astype(out_ref.dtype)


def _choose_tile_n(N, D, K, *, dtype_bytes=4, max_tile=4096, vmem_budget=16 << 20):
    """Largest multiple-of-128 divisor of N, capped by max_tile and a conservative
    VMEM budget (double-buffered input + output tiles), so the default scoped VMEM
    limit is respected on all generations (incl. v7x's 64 MiB physical half).
    Falls back to a full-extent block when N is not 128-aligned, which keeps the
    (8,128) BlockSpec rule legal for any H*W."""
    if N % 128 != 0:
        return N
    best = 128
    tn = 128
    while tn <= min(N, max_tile):
        if N % tn == 0 and 2 * (D + K) * tn * dtype_bytes <= vmem_budget:
            best = tn
        tn += 128
    return best


def pgb_forward(x, codewords, scale):
    """x: (B, D, H, W) float32; codewords: (K, D); scale: (K,). Returns (B, K, H, W)."""
    B, D, H, W = x.shape
    K = codewords.shape[0]
    N = H * W

    # Free reshape (no transpose, no extra HBM pass): NCHW -> (B, D, N)
    x_bdn = x.reshape(B, D, N)

    # Batch-invariant constants folded once in the wrapper (outside the grid loop).
    scale_k1 = scale.astype(jnp.float32).reshape(K, 1)
    cw_f32 = codewords.astype(jnp.float32)
    cw_scaled = -2.0 * scale_k1 * cw_f32                                   # (K, D)
    bias_k1 = scale_k1 * jnp.sum(cw_f32 * cw_f32, axis=-1, keepdims=True)  # (K, 1)

    tn = _choose_tile_n(N, D, K)
    grid = (B, N // tn)

    out_bkn = pl.pallas_call(
        pgb_kernel,
        out_shape=jax.ShapeDtypeStruct((B, K, N), x.dtype),
        grid_spec=pltpu.PrefetchScalarGridSpec(
            num_scalar_prefetch=0,
            grid=grid,
            in_specs=[
                pl.BlockSpec((pl.Squeezed(), D, tn), lambda b, n: (b, 0, n)),
                pl.BlockSpec((K, D), lambda b, n: (0, 0)),
                pl.BlockSpec((K, 1), lambda b, n: (0, 0)),
                pl.BlockSpec((K, 1), lambda b, n: (0, 0)),
            ],
            out_specs=pl.BlockSpec((pl.Squeezed(), K, tn), lambda b, n: (b, 0, n)),
        ),
        compiler_params=pltpu.CompilerParams(
            # Both axes are independent (softmax is fully inside a tile):
            # shards across v7x's two TensorCores even when B == 1.
            dimension_semantics=("parallel", "parallel"),
            # Safe explicit cap on every generation; tiles are sized well below it.
            vmem_limit_bytes=32 << 20,
        ),
    )(x_bdn, cw_scaled, scale_k1, bias_k1)

    return out_bkn.reshape(B, K, H, W)


def pgb_reference(x, codewords, scale):
    """Pure-JAX reference (direct (x - c)^2 formulation) for correctness check."""
    B, D, H, W = x.shape
    K = codewords.shape[0]
    N = H * W
    xb = jnp.transpose(x.reshape(B, D, N), (0, 2, 1))        # (B, N, D)
    diff = xb[:, :, None, :] - codewords[None, None, :, :]   # (B, N, K, D)
    dist = jnp.sum(diff * diff, axis=-1)                     # (B, N, K)
    sl = scale[None, None, :] * dist
    a = jax.nn.softmax(sl, axis=2)                           # (B, N, K)
    return jnp.transpose(a, (0, 2, 1)).reshape(B, K, H, W)


if __name__ == "__main__":
    B, D, H, W, K = 2, 4, 16, 16, 8

    key = jax.random.PRNGKey(0)
    kx, kc, ks = jax.random.split(key, 3)

    x = jax.random.uniform(kx, (B, D, H, W), jnp.float32, minval=-0.5, maxval=0.5)

    # deterministic parameter init matching PGB.reset_params()
    std1 = 1.0 / (K * D) ** 0.5
    codewords = jax.random.uniform(kc, (K, D), jnp.float32, minval=-std1, maxval=std1)
    scale = jax.random.uniform(ks, (K,), jnp.float32, minval=-1.0, maxval=0.0)

    out = jax.block_until_ready(pgb_forward(x, codewords, scale))
    ref = pgb_reference(x, codewords, scale)

    assert out.shape == (B, K, H, W)
    # tolerance slightly looser than f32-exact to allow the approx EUP reciprocal
    # in the softmax denominator and the scaled-expansion distance formula
    max_err = float(jnp.max(jnp.abs(out - ref)))
    assert jnp.allclose(out, ref, atol=1e-3, rtol=1e-3), max_err
    print("KERNEL_OK")
</pallas_src>

<mosaic_0001>
module attributes {stable_mosaic.version = 11 : i64} {
  func.func @pgb_kernel(%arg0: i32, %arg1: i32, %arg2: memref<1x4x256xf32, #tpu.memory_space<vmem>>, %arg3: memref<8x4xf32, #tpu.memory_space<vmem>>, %arg4: memref<8x1xf32, #tpu.memory_space<vmem>>, %arg5: memref<8x1xf32, #tpu.memory_space<vmem>>, %arg6: memref<1x8x256xf32, #tpu.memory_space<vmem>>) attributes {dimension_semantics = [#tpu.dimension_semantics<parallel>, #tpu.dimension_semantics<parallel>], iteration_bounds = array<i64: 2, 1>, scalar_prefetch = 0 : i64, scratch_operands = 0 : i64, tpu.core_type = #tpu.core_type<tc>, window_params = [{transform_indices = @transform_0, window_bounds = array<i64: 1, 4, 256>}, {pipeline_mode = #tpu.pipeline_mode<synchronous>, transform_indices = @transform_1, window_bounds = array<i64: 8, 4>}, {pipeline_mode = #tpu.pipeline_mode<synchronous>, transform_indices = @transform_2, window_bounds = array<i64: 8, 1>}, {pipeline_mode = #tpu.pipeline_mode<synchronous>, transform_indices = @transform_3, window_bounds = array<i64: 8, 1>}, {transform_indices = @transform_4, window_bounds = array<i64: 1, 8, 256>}]} {
    %c0 = arith.constant 0 : index
    %c0_0 = arith.constant 0 : index
    %c0_1 = arith.constant 0 : index
    %0 = vector.load %arg2[%c0, %c0_0, %c0_1] : memref<1x4x256xf32, #tpu.memory_space<vmem>>, vector<1x4x256xf32>
    %1 = vector.shape_cast %0 : vector<1x4x256xf32> to vector<4x256xf32>
    %2 = arith.mulf %1, %1 : vector<4x256xf32>
    %cst = arith.constant dense<0.000000e+00> : vector<256xf32>
    %3 = vector.multi_reduction <add>, %2, %cst [0] : vector<4x256xf32> to vector<256xf32>
    %4 = vector.shape_cast %3 : vector<256xf32> to vector<1x256xf32>
    %c0_2 = arith.constant 0 : index
    %c0_3 = arith.constant 0 : index
    %5 = vector.load %arg3[%c0_2, %c0_3] : memref<8x4xf32, #tpu.memory_space<vmem>>, vector<8x4xf32>
    %cst_4 = arith.constant dense<0.000000e+00> : vector<8x256xf32>
    %6 = tpu.matmul %5, %1, %cst_4 {dimension_numbers = #tpu.dot_dimension_numbers<[1], [0], [0], [1], [0, 0, 1, 1], [], []>} : vector<8x4xf32>, vector<4x256xf32>, vector<8x256xf32> -> vector<8x256xf32>
    %c0_5 = arith.constant 0 : index
    %c0_6 = arith.constant 0 : index
    %7 = vector.load %arg4[%c0_5, %c0_6] : memref<8x1xf32, #tpu.memory_space<vmem>>, vector<8x1xf32>
    %8 = vector.broadcast %7 : vector<8x1xf32> to vector<8x256xf32>
    %9 = vector.broadcast %4 : vector<1x256xf32> to vector<8x256xf32>
    %10 = arith.mulf %8, %9 : vector<8x256xf32>
    %11 = arith.addf %10, %6 : vector<8x256xf32>
    %c0_7 = arith.constant 0 : index
    %c0_8 = arith.constant 0 : index
    %12 = vector.load %arg5[%c0_7, %c0_8] : memref<8x1xf32, #tpu.memory_space<vmem>>, vector<8x1xf32>
    %13 = vector.broadcast %12 : vector<8x1xf32> to vector<8x256xf32>
    %14 = arith.addf %11, %13 : vector<8x256xf32>
    %cst_9 = arith.constant dense<0xFF800000> : vector<256xf32>
    %15 = vector.multi_reduction <maximumf>, %14, %cst_9 [0] : vector<8x256xf32> to vector<256xf32>
    %16 = vector.shape_cast %15 : vector<256xf32> to vector<1x256xf32>
    %17 = vector.broadcast %16 : vector<1x256xf32> to vector<8x256xf32>
    %18 = arith.subf %14, %17 : vector<8x256xf32>
    %19 = math.exp %18 : vector<8x256xf32>
    %cst_10 = arith.constant dense<0.000000e+00> : vector<256xf32>
    %20 = vector.multi_reduction <add>, %19, %cst_10 [0] : vector<8x256xf32> to vector<256xf32>
    %21 = vector.shape_cast %20 : vector<256xf32> to vector<1x256xf32>
    %22 = tpu.reciprocal %21 {approx = true} : vector<1x256xf32> -> vector<1x256xf32>
    %23 = vector.broadcast %22 : vector<1x256xf32> to vector<8x256xf32>
    %24 = arith.mulf %19, %23 : vector<8x256xf32>
    %c0_11 = arith.constant 0 : index
    %c0_12 = arith.constant 0 : index
    %c0_13 = arith.constant 0 : index
    %25 = vector.load %arg6[%c0_11, %c0_12, %c0_13] : memref<1x8x256xf32, #tpu.memory_space<vmem>>, vector<1x8x256xf32>
    %26 = vector.shape_cast %25 : vector<1x8x256xf32> to vector<8x256xf32>
    %27 = vector.shape_cast %24 : vector<8x256xf32> to vector<1x8x256xf32>
    tpu.vector_store %arg6[%c0_11, %c0_12, %c0_13], %27 {strides = array<i32>} : memref<1x8x256xf32, #tpu.memory_space<vmem>>, vector<1x8x256xf32>,
    return
  }
  func.func @transform_0(%arg0: i32, %arg1: i32) -> (i32, i32, i32) {
    %c0_i32 = arith.constant 0 : i32
    %c0_i32_0 = arith.constant 0 : i32
    return %arg0, %c0_i32, %arg1 : i32, i32, i32
  }
  func.func @transform_1(%arg0: i32, %arg1: i32) -> (i32, i32) {
    %c0_i32 = arith.constant 0 : i32
    %c0_i32_0 = arith.constant 0 : i32
    %c0_i32_1 = arith.constant 0 : i32
    return %c0_i32, %c0_i32_0 : i32, i32
  }
  func.func @transform_2(%arg0: i32, %arg1: i32) -> (i32, i32) {
    %c0_i32 = arith.constant 0 : i32
    %c0_i32_0 = arith.constant 0 : i32
    %c0_i32_1 = arith.constant 0 : i32
    return %c0_i32, %c0_i32_0 : i32, i32
  }
  func.func @transform_3(%arg0: i32, %arg1: i32) -> (i32, i32) {
    %c0_i32 = arith.constant 0 : i32
    %c0_i32_0 = arith.constant 0 : i32
    %c0_i32_1 = arith.constant 0 : i32
    return %c0_i32, %c0_i32_0 : i32, i32
  }
  func.func @transform_4(%arg0: i32, %arg1: i32) -> (i32, i32, i32) {
    %c0_i32 = arith.constant 0 : i32
    %c0_i32_0 = arith.constant 0 : i32
    return %arg0, %c0_i32, %arg1 : i32, i32, i32
  }
}

</mosaic_0001>

<llo_original>
// kernel: tpu_custom_call.1
$region0: #{tpu_custom_call.1}
  #allocation0 [shape = 'u32[]', space=smem, size = 0x4, offset = 0x4, fixed_abs, tag = 'smem constant byte address 0x4 - core index']
  #allocation1 [shape = 'u32[144,128]{1,0:T(1,128)}', space=vmem, size = 0x12000, scoped, tag = 'internal scratch']
  %s0 = inlined_call_operand.vmem [shape: f32[2,4,256], index: 0, kind: input, shape index: {}]
  %s1 = inlined_call_operand.vmem [shape: f32[8,4], index: 1, kind: input, shape index: {}]
  %s2 = inlined_call_operand.vmem [shape: f32[8,1], index: 2, kind: input, shape index: {}]
  %s3 = inlined_call_operand.vmem [shape: f32[8,1], index: 3, kind: input, shape index: {}]
  %s4 = inlined_call_operand.hbm [shape: f32[2,8,256], index: 4, kind: output, shape index: {}]
  %s5 = sld [smem:[#allocation0]]
  $region49: #{tpu_custom_call.1} parent=0
    _
  %s7 = ssub.s32 1, %s5
  %s8 = scalar_select 0, %s7, %s5
  $region1: #{tpu_custom_call.1} parent=0
    #allocation2 [shape = 'u8[16384]{0}', space=vmem, size = 0x4000, scoped, tag = 'output window, operand 0']
    #allocation3 [shape = 's32[2]{0}', space=sflag, size = 0x8, scoped, tag = 'scoped memory for tpu_custom_call.1']
    %9 = vsyncpa [#allocation3], 0
    %s10 = scalar_lea.sflag [#allocation3], 1
    %11 = vsyncpa %s10, 0
    loop: start=0, step=1, limit=4
    $region2: #{tpu_custom_call.1} parent=1 // loop_pre_header
      _
    $region3: #{tpu_custom_call.1} parent=1 // loop_header
      %s13 = sphi 0, %s17
      %p14 = scmp.ge.s32.totalorder %s13, 4
      %s20 = sphi 0, %s32
      %s21 = sphi 0, %s28
      %s22 = sphi 0, %s20
      %s23 = sphi 0, %s21
      %s24 = sphi 0, %s22
      %s25 = sphi 0, %s23
      %s37 = sphi 0, %s39
      %s40 = sphi 0, %s37
      %s41 = sphi 0, %s40
      %s57 = sphi 0, %s41
      %s61 = sphi 0, %s61
      %s63 = sphi 0, %s61
      %s64 = sphi 0, %s63
      %s78 = sphi 0, %s64
      %s82 = sphi 0, %s82
      %s84 = sphi 0, %s82
      %s85 = sphi 0, %s84
      %s99 = sphi 0, %s85
      %s103 = sphi 0, %s103
      %s105 = sphi 0, %s103
      %s106 = sphi 0, %s105
      %s120 = sphi 0, %s106
      %s128 = sphi 0, %s130
      %s131 = sphi 0, %s128
      %s132 = sphi 0, %s131
      %s148 = sphi 0, %s132
    $region4: #{tpu_custom_call.1} parent=1 // loop_header_branch
      %16 = sbr.rel (%p14) target = $region8
    $region5: #{tpu_custom_call.1} parent=1 // loop_body
      %s18 = ssub.s32 %s13, 1
      %s19 = ssub.s32 %s13, 2
      %s26 = sadd.s32 1, %s21
      %p27 = scmp.ge.s32.totalorder %s26, 1
      %s28 = scalar_select %p27, 0, %s26
      %s29 = sadd.s32 1, %s20
      %s30 = scalar_select %p27, %s29, %s20
      %p31 = scmp.ge.s32.totalorder %s30, 2
      %s32 = scalar_select %p31, 0, %s30
      %s33 = ssub.s32 %s20, %s32
      %s34 = ssub.s32 %s21, %s28
      %s35 = sor.u32 %s33, %s34
      %p36 = scmp.eq.s32.totalorder %s35, 0
      %s38 = sadd.s32 %s37, 1
      %s39 = scalar_select %p36, %s37, %s38
      %p42 = pneg %p36
      %p43 = scmp.eq.s32.totalorder %s13, 1
      %p44 = por %p42, %p43
      %p45 = scmp.ne.s32.totalorder %s37, %s40
      %p46 = scmp.eq.s32.totalorder %s13, 0
      %p47 = por %p45, %p46
      %p48 = scmp.ne.s32.totalorder %s37, %s40
      %p49 = scmp.eq.s32.totalorder %s18, 1
      %p50 = por %p48, %p49
      %p51 = scmp.ne.s32.totalorder %s40, %s41
      %p52 = scmp.eq.s32.totalorder %s18, 0
      %p53 = por %p51, %p52
      %p54 = scmp.ne.s32.totalorder %s40, %s41
      %p55 = scmp.eq.s32.totalorder %s19, 1
      %p56 = por %p54, %p55
      %p58 = scmp.ne.s32.totalorder %s41, %s57
      %p59 = scmp.eq.s32.totalorder %s19, 0
      %p60 = por %p58, %p59
      %s62 = sadd.s32 %s61, 1
      %p65 = scmp.eq.s32.totalorder %s13, 1
      %p66 = scmp.ne.s32.totalorder %s61, %s63
      %p67 = scmp.eq.s32.totalorder %s13, 0
      %p68 = por %p66, %p67
      %p69 = scmp.ne.s32.totalorder %s61, %s63
      %p70 = scmp.eq.s32.totalorder %s18, 1
      %p71 = por %p69, %p70
      %p72 = scmp.ne.s32.totalorder %s63, %s64
      %p73 = scmp.eq.s32.totalorder %s18, 0
      %p74 = por %p72, %p73
      %p75 = scmp.ne.s32.totalorder %s63, %s64
      %p76 = scmp.eq.s32.totalorder %s19, 1
      %p77 = por %p75, %p76
      %p79 = scmp.ne.s32.totalorder %s64, %s78
      %p80 = scmp.eq.s32.totalorder %s19, 0
      %p81 = por %p79, %p80
      %s83 = sadd.s32 %s82, 1
      %p86 = scmp.eq.s32.totalorder %s13, 1
      %p87 = scmp.ne.s32.totalorder %s82, %s84
      %p88 = scmp.eq.s32.totalorder %s13, 0
      %p89 = por %p87, %p88
      %p90 = scmp.ne.s32.totalorder %s82, %s84
      %p91 = scmp.eq.s32.totalorder %s18, 1
      %p92 = por %p90, %p91
      %p93 = scmp.ne.s32.totalorder %s84, %s85
      %p94 = scmp.eq.s32.totalorder %s18, 0
      %p95 = por %p93, %p94
      %p96 = scmp.ne.s32.totalorder %s84, %s85
      %p97 = scmp.eq.s32.totalorder %s19, 1
      %p98 = por %p96, %p97
      %p100 = scmp.ne.s32.totalorder %s85, %s99
      %p101 = scmp.eq.s32.totalorder %s19, 0
      %p102 = por %p100, %p101
      %s104 = sadd.s32 %s103, 1
      %p107 = scmp.eq.s32.totalorder %s13, 1
      %p108 = scmp.ne.s32.totalorder %s103, %s105
      %p109 = scmp.eq.s32.totalorder %s13, 0
      %p110 = por %p108, %p109
      %p111 = scmp.ne.s32.totalorder %s103, %s105
      %p112 = scmp.eq.s32.totalorder %s18, 1
      %p113 = por %p111, %p112
      %p114 = scmp.ne.s32.totalorder %s105, %s106
      %p115 = scmp.eq.s32.totalorder %s18, 0
      %p116 = por %p114, %p115
      %p117 = scmp.ne.s32.totalorder %s105, %s106
      %p118 = scmp.eq.s32.totalorder %s19, 1
      %p119 = por %p117, %p118
      %p121 = scmp.ne.s32.totalorder %s106, %s120
      %p122 = scmp.eq.s32.totalorder %s19, 0
      %p123 = por %p121, %p122
      %s124 = ssub.s32 %s20, %s32
      %s125 = ssub.s32 %s21, %s28
      %s126 = sor.u32 %s124, %s125
      %p127 = scmp.eq.s32.totalorder %s126, 0
      %s129 = sadd.s32 %s128, 1
      %s130 = scalar_select %p127, %s128, %s129
      %p133 = pneg %p127
      %p134 = scmp.eq.s32.totalorder %s13, 1
      %p135 = por %p133, %p134
      %p136 = scmp.ne.s32.totalorder %s128, %s131
      %p137 = scmp.eq.s32.totalorder %s13, 0
      %p138 = por %p136, %p137
      %p139 = scmp.ne.s32.totalorder %s128, %s131
      %p140 = scmp.eq.s32.totalorder %s18, 1
      %p141 = por %p139, %p140
      %p142 = scmp.ne.s32.totalorder %s131, %s132
      %p143 = scmp.eq.s32.totalorder %s18, 0
      %p144 = por %p142, %p143
      %p145 = scmp.ne.s32.totalorder %s131, %s132
      %p146 = scmp.eq.s32.totalorder %s19, 1
      %p147 = por %p145, %p146
      %p149 = scmp.ne.s32.totalorder %s132, %s148
      %p150 = scmp.eq.s32.totalorder %s19, 0
      %p151 = por %p149, %p150
      %p152 = scmp.le.s32.totalorder 1, %s13
      %p153 = scmp.lt.s32.totalorder %s13, 3
      %p154 = pnand %p152, %p153
      %p155 = pneg %p154
      // Predicated region
      $region9: #{tpu_custom_call.1} parent=5 // pred_check
        _
      $region10: #{tpu_custom_call.1} parent=5 // pred_check_branch
        %157 = sbr.rel (%p154) target = $region12
      $region11: #{tpu_custom_call.1} parent=5 // pred_region
        %s158 = ssub.s32 %s13, 1
        // Predicated region
        $region13: #{tpu_custom_call.1} parent=11 // pred_check
          %p159 = pneg %p74
        $region14: #{tpu_custom_call.1} parent=11 // pred_check_branch
          %161 = sbr.rel (%p159) target = $region16
        $region15: #{tpu_custom_call.1} parent=11 // pred_region
          _
        $region16: #{tpu_custom_call.1} parent=11 // pred_fallthru
          _
        // Predicated region
        $region17: #{tpu_custom_call.1} parent=11 // pred_check
          %p162 = pneg %p95
        $region18: #{tpu_custom_call.1} parent=11 // pred_check_branch
          %164 = sbr.rel (%p162) target = $region20
        $region19: #{tpu_custom_call.1} parent=11 // pred_region
          _
        $region20: #{tpu_custom_call.1} parent=11 // pred_fallthru
          _
        // Predicated region
        $region21: #{tpu_custom_call.1} parent=11 // pred_check
          %p165 = pneg %p116
        $region22: #{tpu_custom_call.1} parent=11 // pred_check_branch
          %167 = sbr.rel (%p165) target = $region24
        $region23: #{tpu_custom_call.1} parent=11 // pred_region
          _
        $region24: #{tpu_custom_call.1} parent=11 // pred_fallthru
          _
      $region12: #{tpu_custom_call.1} parent=5 // pred_fallthru
        _
      %p168 = scmp.lt.s32.totalorder %s13, 2
      // Predicated region
      $region25: #{tpu_custom_call.1} parent=5 // pred_check
        %p169 = pneg %p168
      $region26: #{tpu_custom_call.1} parent=5 // pred_check_branch
        %171 = sbr.rel (%p169) target = $region28
      $region27: #{tpu_custom_call.1} parent=5 // pred_region
        // Predicated region
        $region29: #{tpu_custom_call.1} parent=27 // pred_check
          %p172 = pneg %p47
        $region30: #{tpu_custom_call.1} parent=27 // pred_check_branch
          %174 = sbr.rel (%p172) target = $region32
        $region31: #{tpu_custom_call.1} parent=27 // pred_region
          %s175 = smul.u32 2, %s21
          %p176 = scmp.lt.s32.totalorder %s20, 1
          %s177 = scalar_select %p176, %s20, 1
          %p178 = scmp.lt.s32.totalorder %s175, 1
          %s179 = scalar_select %p178, %s175, 1
          %s180 = smul.addr %s177, 2
          %s181 = sadd.s32 %s179, %s180
          %s182 = smul.addr %s181, 4
          %s183 = scalar_lea.vmem %s0, %s182
          %s184 = smul.u32 2, %s21
        $region32: #{tpu_custom_call.1} parent=27 // pred_fallthru
          _
      $region28: #{tpu_custom_call.1} parent=5 // pred_fallthru
        _
      %p185 = scmp.le.s32.totalorder 1, %s13
      %p186 = scmp.lt.s32.totalorder %s13, 3
      %p187 = pnand %p185, %p186
      %p188 = pneg %p187
      // Predicated region
      $region33: #{tpu_custom_call.1} parent=5 // pred_check
        _
      $region34: #{tpu_custom_call.1} parent=5 // pred_check_branch
        %190 = sbr.rel (%p187) target = $region36
      $region35: #{tpu_custom_call.1} parent=5 // pred_region
        %s191 = ssub.s32 %s13, 1
        %s192 = smul.u32 2, %s23
        %p193 = scmp.lt.s32.totalorder %s22, 1
        %s194 = scalar_select %p193, %s22, 1
        %p195 = scmp.lt.s32.totalorder %s192, 1
        %s196 = scalar_select %p195, %s192, 1
        %s197 = smul.addr %s194, 2
        %s198 = sadd.s32 %s196, %s197
        %s199 = smul.addr %s198, 4
        %s200 = scalar_lea.vmem %s0, %s199
        %p201 = pneg %p53
        %p202 = pneg %p50
        %p203 = pneg %p74
        %p204 = pneg %p71
        %p205 = pneg %p95
        %p206 = pneg %p92
        %p207 = pneg %p116
        %p208 = pneg %p113
        %p209 = pneg %p144
        %p210 = pneg %p141
        %s211 = sand.u32 %s131, 1
        %s212 = scalar_lea.sflag [#allocation3], %s211
        %s213 = sand.u32 %s131, 1
        %s214 = smul.addr %s213, 16
        %s215 = scalar_lea.vmem [#allocation2], %s214
        %s216 = smul.u32 2, %s23
        %p217 = scmp.lt.s32.totalorder %s22, 1
        %s218 = scalar_select %p217, %s22, 1
        %p219 = scmp.lt.s32.totalorder %s216, 1
        %s220 = scalar_select %p219, %s216, 1
        %s221 = smul.addr %s218, 2
        %s222 = sadd.s32 %s220, %s221
        %s223 = smul.addr %s222, 4
        %s224 = scalar_lea.vmem %s0, %s223
        %s225 = smul.u32 2, %s23
        %s226 = smul.u32 2, %s23
        %v227 = vld [vmem:[%s224] sm:$0xff]
        %v228 = vmul.f32 %v227, %v227
        %v230 = vcombine.high %v228, %v228
        %vm232 = vcmask 1043456
        %v233 = vsel %vm232, %v228, 0.0
        %v234 = vrot.slane %v233, 4
        %v235 = vadd.f32 %v233, %v234
        %v236 = vrot.slane %v235, 2
        %v237 = vadd.f32 %v235, %v236
        %v238 = vrot.slane %v237, 1
        %v239 = vadd.f32 %v237, %v238
        %v240 = vsel %vm232, %v230, 0.0
        %v241 = vrot.slane %v240, 4
        %v242 = vadd.f32 %v240, %v241
        %v243 = vrot.slane %v242, 2
        %v244 = vadd.f32 %v242, %v243
        %v245 = vrot.slane %v244, 1
        %v246 = vadd.f32 %v244, %v245
        %v247 = vld [vmem:[%s1] sm:$0xff]
        %v249 = vcombine.high %v227, %v227
        %vm250 = vcmask 31744
        %v252 = vsel %vm250, %v247, 0
        %v254 = vsel %vm232, %v227, 0
        %v256 = vsel %vm232, %v249, 0
        %258 = vmatprep.subr.mxu0 %v256
        %259 = vmatpush1.msra.mxu0 %v254
        %260 = vmatprep.subr.mxu0 0.0
        %261 = vmatpush1.msra.mxu0 0.0
        %262 = vmatprep.subr.mxu0 0.0
        %263 = vmatpush1.msra.mxu0 0.0
        %264 = vmatprep.subr.mxu0 0.0
        %265 = vmatpush1.msra.mxu0 0.0
        %266 = vmatprep.subr.mxu0 0.0
        %267 = vmatpush1.msra.mxu0 0.0
        %268 = vmatprep.subr.mxu0 0.0
        %269 = vmatpush1.msra.mxu0 0.0
        %270 = vmatprep.subr.mxu0 0.0
        %271 = vmatpush1.msra.mxu0 0.0
        %272 = vmatprep.subr.mxu0 0.0
        %273 = vmatpush1.msra.mxu0 0.0
        %274 = vmatprep.subr.mxu0 0.0
        %275 = vmatpush1.msra.mxu0 0.0
        %276 = vmatprep.subr.mxu0 0.0
        %277 = vmatpush1.msra.mxu0 0.0
        %278 = vmatprep.subr.mxu0 0.0
        %279 = vmatpush1.msra.mxu0 0.0
        %280 = vmatprep.subr.mxu0 0.0
        %281 = vmatpush1.msra.mxu0 0.0
        %282 = vmatprep.subr.mxu0 0.0
        %283 = vmatpush1.msra.mxu0 0.0
        %284 = vmatprep.subr.mxu0 0.0
        %285 = vmatpush1.msra.mxu0 0.0
        %286 = vmatprep.subr.mxu0 0.0
        %287 = vmatpush1.msra.mxu0 0.0
        %288 = vmatprep.subr.mxu0 0.0
        %289 = vmatpush1.msra.mxu0 0.0
        %290 = vmatprep.subr.mxu0 0.0
        %291 = vmatpush1.msra.mxu0 0.0
        %292 = vmatprep.subr.mxu0 0.0
        %293 = vmatpush1.msra.mxu0 0.0
        %294 = vmatprep.subr.mxu0 0.0
        %295 = vmatpush1.msra.mxu0 0.0
        %296 = vmatprep.subr.mxu0 0.0
        %297 = vmatpush1.msra.mxu0 0.0
        %298 = vmatprep.subr.mxu0 0.0
        %299 = vmatpush1.msra.mxu0 0.0
        %300 = vmatprep.subr.mxu0 0.0
        %301 = vmatpush1.msra.mxu0 0.0
        %302 = vmatprep.subr.mxu0 0.0
        %303 = vmatpush1.msra.mxu0 0.0
        %304 = vmatprep.subr.mxu0 0.0
        %305 = vmatpush1.msra.mxu0 0.0
        %306 = vmatprep.subr.mxu0 0.0
        %307 = vmatpush1.msra.mxu0 0.0
        %308 = vmatprep.subr.mxu0 0.0
        %309 = vmatpush1.msra.mxu0 0.0
        %310 = vmatprep.subr.mxu0 0.0
        %311 = vmatpush1.msra.mxu0 0.0
        %312 = vmatprep.subr.mxu0 0.0
        %313 = vmatpush1.msra.mxu0 0.0
        %314 = vmatprep.subr.mxu0 0.0
        %315 = vmatpush1.msra.mxu0 0.0
        %316 = vmatprep.subr.mxu0 0.0
        %317 = vmatpush1.msra.mxu0 0.0
        %318 = vmatprep.subr.mxu0 0.0
        %319 = vmatpush1.msra.mxu0 0.0
        %320 = vmatprep.subr.mxu0 0.0
        %321 = vmatpush1.msra.mxu0 0.0
        %322 = vmatprep.mubr.f32.mxu0 0.0
        %323 = vmatmul.mubr.f32.gmra.mrb[0].mxu0 %v252
        %v324 = vpop.f32.mrb[0].mxu0
        %v325 = vadd.f32 0.0, %v324
        %v326 = vpop.f32.mrb[0].mxu0
        %v327 = vadd.f32 0.0, %v326
        %328 = vdwg.mxu0
        %v329 = vld [vmem:[%s2] sm:$0xff]
        %331 = vset.pattern.permute.xlu0 0
        %332 = vperm.xlu0 %331, %v329
        %v333 = vpop.permute.xlu0 %332
        %v335 = vmul.f32 %v333, %v239
        %v336 = vmul.f32 %v333, %v246
        %v337 = vadd.f32 %v335, %v325
        %v338 = vadd.f32 %v336, %v327
        %v339 = vld [vmem:[%s3] sm:$0xff]
        %341 = vset.pattern.permute.xlu0 0
        %342 = vperm.xlu0 %341, %v339
        %v343 = vpop.permute.xlu0 %342
        %v345 = vadd.f32 %v337, %v343
        %v346 = vadd.f32 %v338, %v343
        %v347 = vrot.slane %v345, 4
        %v348 = vmax.f32 %v345, %v347
        %v349 = vrot.slane %v348, 2
        %v350 = vmax.f32 %v348, %v349
        %v351 = vrot.slane %v350, 1
        %v352 = vmax.f32 %v350, %v351
        %v353 = vrot.slane %v346, 4
        %v354 = vmax.f32 %v346, %v353
        %v355 = vrot.slane %v354, 2
        %v356 = vmax.f32 %v354, %v355
        %v357 = vrot.slane %v356, 1
        %v358 = vmax.f32 %v356, %v357
        %v359 = vsub.f32 %v345, %v352
        %v360 = vsub.f32 %v346, %v358
        %v361 = vmul.f32 %v359, 1.442695
        %v362 = vpow.pop %v361
        %v363 = vmul.f32 %v360, 1.442695
        %v364 = vpow.pop %v363
        %v365 = vrot.slane %v362, 4
        %v366 = vadd.f32 %v362, %v365
        %v367 = vrot.slane %v366, 2
        %v368 = vadd.f32 %v366, %v367
        %v369 = vrot.slane %v368, 1
        %v370 = vadd.f32 %v368, %v369
        %v371 = vrot.slane %v364, 4
        %v372 = vadd.f32 %v364, %v371
        %v373 = vrot.slane %v372, 2
        %v374 = vadd.f32 %v372, %v373
        %v375 = vrot.slane %v374, 1
        %v376 = vadd.f32 %v374, %v375
        %v377 = vrcp.pop %v370
        %v378 = vrcp.pop %v376
        %v379 = vmul.f32 %v362, %v377
        %v380 = vmul.f32 %v364, %v378
        %381 = vst [vmem:[%s215] sm:$0xff] %v379
        %382 = vst [vmem:[%s215 + $0x8] sm:$0xff] %v380
        %s383 = sand.u32 %s131, 1
        %s384 = scalar_lea.sflag [#allocation3], %s383
        %s385 = sand.u32 %s131, 1
        %s386 = smul.addr %s385, 16
        %s387 = scalar_lea.vmem [#allocation2], %s386
        // Predicated region
        $region37: #{tpu_custom_call.1} parent=35 // pred_check
          %p388 = pneg %p141
        $region38: #{tpu_custom_call.1} parent=35 // pred_check_branch
          %390 = sbr.rel (%p388) target = $region40
        $region39: #{tpu_custom_call.1} parent=35 // pred_region
          %s391 = smul.u32 2, %s23
          %s393 = ssub.s32 256, 256
          %394 = vsyncadd %s384, %s393
          %s395 = smul.addr %s22, 2
          %s396 = sadd.s32 %s391, %s395
          %s397 = smul.addr %s396, 128
          %s398 = scalar_lea.hbm %s4, %s397
          %s400 = sshll.u32 %s387, 4
          %s401 = int_to_ptr.vmem [resolvable:$true] %s400
          %403 = dma.vmem_to_hbm [thread:$0]  %s401, 256, %s398, %s384
        $region40: #{tpu_custom_call.1} parent=35 // pred_fallthru
          _
      $region36: #{tpu_custom_call.1} parent=5 // pred_fallthru
        _
      %p404 = scmp.le.s32.totalorder 2, %s13
      // Predicated region
      $region41: #{tpu_custom_call.1} parent=5 // pred_check
        %p405 = pneg %p404
      $region42: #{tpu_custom_call.1} parent=5 // pred_check_branch
        %407 = sbr.rel (%p405) target = $region44
      $region43: #{tpu_custom_call.1} parent=5 // pred_region
        %s408 = ssub.s32 %s13, 2
        // Predicated region
        $region45: #{tpu_custom_call.1} parent=43 // pred_check
          %p409 = pneg %p147
        $region46: #{tpu_custom_call.1} parent=43 // pred_check_branch
          %411 = sbr.rel (%p409) target = $region48
        $region47: #{tpu_custom_call.1} parent=43 // pred_region
          %s412 = sand.u32 %s132, 1
          %s413 = scalar_lea.sflag [#allocation3], %s412
          %s414 = sand.u32 %s132, 1
          %s415 = smul.addr %s414, 16
          %s416 = scalar_lea.vmem [#allocation2], %s415
          %417 = dma.done %s413, 256
        $region48: #{tpu_custom_call.1} parent=43 // pred_fallthru
          _
      $region44: #{tpu_custom_call.1} parent=5 // pred_fallthru
        _
    $region6: #{tpu_custom_call.1} parent=1 // loop_footer
      %s17 = sadd.s32 1, %s13
    $region7: #{tpu_custom_call.1} parent=1 // loop_footer_branch
      %12 = sbr.rel target = $region3
    $region8: #{tpu_custom_call.1} parent=1 // loop_exit
      _
    %418 = vsyncpa [#allocation3], 1
    %s419 = scalar_lea.sflag [#allocation3], 1
    %420 = vsyncpa %s419, 1

</llo_original>
